<compile_context>
chip_gen: v7x
topology: tpu7x:2x2x1
jax: 0.10.0
libtpu: 0.0.40
codegen_flags: <defaults>
</compile_context>

<pallas_src>
import functools

import jax
import jax.numpy as jnp
from jax.experimental import pallas as pl
from jax.experimental.pallas import tpu as pltpu

# Logical dims (PyTorch module) and lane-padded logits dim.
D_IN, D1, D2, D3, D_OUT = 784, 256, 128, 64, 10
D_OUT_PAD = 128       # lane-dense logits / output stores
NEG_BIG = -1e30       # bias of padded logit lanes -> exp() underflows to 0


def mlp_kernel(x_ref,
               w1_ref, b1_ref,
               w2_ref, b2_ref,
               w3_ref, b3_ref,
               w4_ref, b4_ref,
               o_ref):
    # f32 input streamed from HBM; cast to bf16 in VMEM (rides the spare VPU
    # slot) so all matmuls run bf16 x bf16 -> f32 accumulation on the MXU.
    x = x_ref[...].astype(jnp.bfloat16)                               # (TB, 784)

    h = jnp.dot(x, w1_ref[...], preferred_element_type=jnp.float32) + b1_ref[...]
    h = jnp.maximum(h, 0.0)

    h = jnp.dot(h.astype(jnp.bfloat16), w2_ref[...],
                preferred_element_type=jnp.float32) + b2_ref[...]
    h = jnp.maximum(h, 0.0)

    h = jnp.dot(h.astype(jnp.bfloat16), w3_ref[...],
                preferred_element_type=jnp.float32) + b3_ref[...]
    h = jnp.maximum(h, 0.0)

    # Padded logit lanes carry zero weights and a -1e30 bias, so they do not
    # perturb the max / sum below.
    z = jnp.dot(h.astype(jnp.bfloat16), w4_ref[...],
                preferred_element_type=jnp.float32) + b4_ref[...]     # (TB, 128)

    # Numerically stable log_softmax along the last axis (f32 throughout).
    m = jnp.max(z, axis=-1, keepdims=True)
    s = z - m
    lse = jnp.log(jnp.sum(jnp.exp(s), axis=-1, keepdims=True))
    o_ref[...] = (s - lse).astype(o_ref.dtype)


def _round_up(v, m):
    return ((v + m - 1) // m) * m


def _choose_tile(B, tile_b):
    """Batch tile: >=4 parallel grid blocks when possible (megacore / v7x dual
    TC), multiple of 16 (bf16 output sublanes), capped at 1024 rows; tiny
    batches use tile == B so block dims equal the full array dims."""
    if B <= 16:
        return B
    t = _round_up(pl.cdiv(B, 4), 16)
    t = min(t, max(int(tile_b), 16), 1024)
    return max(t, 16)


@functools.partial(jax.jit, static_argnames=("tile_b",))
def mlp_forward(x, kparams, tile_b=1024):
    """x: (B, 1, 28, 28) float32 (NCHW, like the PyTorch module).
    kparams: output of prepare_params()."""
    B = x.shape[0]
    x2 = x.reshape(B, -1).astype(jnp.float32)      # == x.view(x.shape[0], -1)
    assert x2.shape[1] == D_IN, "expected 784 input features"

    w1, b1, w2, b2, w3, b3, w4, b4 = kparams

    tile = _choose_tile(B, tile_b)
    n_blocks = pl.cdiv(B, tile)
    grid = (n_blocks,)

    const = lambda shape: pl.BlockSpec(shape, lambda i: (0, 0))

    # Advisory cost estimate (matches the real kernel: unpadded K, f32 in,
    # bf16 out, 128-lane logits).
    mm_elems = D_IN * D1 + D1 * D2 + D2 * D3 + D3 * D_OUT_PAD
    b_work = n_blocks * tile
    cost = pl.CostEstimate(
        flops=2 * b_work * mm_elems,
        transcendentals=b_work * (D_OUT_PAD + 1),        # exp per lane + log
        bytes_accessed=(B * D_IN * 4                     # f32 input
                        + B * D_OUT_PAD * 2              # bf16 output
                        + 2 * mm_elems                   # bf16 weights
                        + 4 * (D1 + D2 + D3 + D_OUT_PAD)))  # f32 biases

    out = pl.pallas_call(
        mlp_kernel,
        out_shape=jax.ShapeDtypeStruct((B, D_OUT_PAD), jnp.bfloat16),
        grid=grid,
        in_specs=[
            pl.BlockSpec((tile, D_IN), lambda i: (i, 0)),
            const((D_IN, D1)),      const((1, D1)),
            const((D1, D2)),        const((1, D2)),
            const((D2, D3)),        const((1, D3)),
            const((D3, D_OUT_PAD)), const((1, D_OUT_PAD)),
        ],
        out_specs=pl.BlockSpec((tile, D_OUT_PAD), lambda i: (i, 0)),
        compiler_params=pltpu.CompilerParams(
            dimension_semantics=("parallel",),
            vmem_limit_bytes=48 * 1024 * 1024),
        cost_estimate=cost,
    )(x2, w1, b1, w2, b2, w3, b3, w4, b4)

    return out[:B, :D_OUT]


def init_params(key):
    """Deterministic synthetic parameters with nn.Linear-like scaling.
    Weights stored (in_features, out_features); biases (out_features,)."""
    dims = [(D_IN, D1), (D1, D2), (D2, D3), (D3, D_OUT)]
    params = []
    for fan_in, fan_out in dims:
        key, kw, kb = jax.random.split(key, 3)
        bound = 1.0 / (fan_in ** 0.5)
        w = jax.random.uniform(kw, (fan_in, fan_out), jnp.float32, -bound, bound)
        b = jax.random.uniform(kb, (fan_out,), jnp.float32, -bound, bound)
        params += [w, b]
    return tuple(params)


def prepare_params(params):
    """Cast logical f32 params into the kernel layout:
       * w1/w2/w3 cast to bf16 at their logical shapes (no K pad)
       * w4 columns zero-padded / b4 padded 10 -> 128 lanes with -1e30 bias so
         padded logits vanish under log_softmax
       * biases kept f32 as 2-D (1, N)."""
    w1, b1, w2, b2, w3, b3, w4, b4 = params
    w4p = jnp.zeros((D3, D_OUT_PAD), jnp.float32).at[:, :D_OUT].set(w4)
    b4p = jnp.full((D_OUT_PAD,), NEG_BIG, jnp.float32).at[:D_OUT].set(b4)
    return (w1.astype(jnp.bfloat16),  b1.reshape(1, D1).astype(jnp.float32),
            w2.astype(jnp.bfloat16),  b2.reshape(1, D2).astype(jnp.float32),
            w3.astype(jnp.bfloat16),  b3.reshape(1, D3).astype(jnp.float32),
            w4p.astype(jnp.bfloat16), b4p.reshape(1, D_OUT_PAD))


def reference_forward(x, params):
    """Pure-JAX f32 reference matching the PyTorch forward."""
    w1, b1, w2, b2, w3, b3, w4, b4 = params
    h = x.reshape(x.shape[0], -1)
    h = jax.nn.relu(h @ w1 + b1)
    h = jax.nn.relu(h @ w2 + b2)
    h = jax.nn.relu(h @ w3 + b3)
    z = h @ w4 + b4
    return jax.nn.log_softmax(z, axis=1)


if __name__ == "__main__":
    key = jax.random.PRNGKey(0)
    kx, kp = jax.random.split(key)

    # Small Fashion-MNIST-shaped demo batch: (B, 1, 28, 28) NCHW.
    B = 8
    x = jax.random.normal(kx, (B, 1, 28, 28), jnp.float32)
    params = init_params(kp)
    kparams = prepare_params(params)

    out = mlp_forward(x, kparams)
    out = jax.block_until_ready(out)
    out_f32 = out.astype(jnp.float32)

    ref = reference_forward(x, params)
    assert out.shape == (B, D_OUT)
    assert bool(jnp.all(jnp.isfinite(out_f32)))
    # bf16 matmul operands + bf16 output vs. the pure-f32 reference ->
    # relaxed tolerance.
    max_err = float(jnp.max(jnp.abs(out_f32 - ref)))
    assert jnp.allclose(out_f32, ref, atol=7.5e-2, rtol=7.5e-2), \
        f"max abs err {max_err}"

    print("KERNEL_OK")
</pallas_src>

<mosaic_0001>
module attributes {stable_mosaic.version = 11 : i64} {
  func.func @mlp_kernel(%arg0: i32, %arg1: memref<8x784xf32, #tpu.memory_space<vmem>>, %arg2: memref<784x256xbf16, #tpu.memory_space<vmem>>, %arg3: memref<1x256xf32, #tpu.memory_space<vmem>>, %arg4: memref<256x128xbf16, #tpu.memory_space<vmem>>, %arg5: memref<1x128xf32, #tpu.memory_space<vmem>>, %arg6: memref<128x64xbf16, #tpu.memory_space<vmem>>, %arg7: memref<1x64xf32, #tpu.memory_space<vmem>>, %arg8: memref<64x128xbf16, #tpu.memory_space<vmem>>, %arg9: memref<1x128xf32, #tpu.memory_space<vmem>>, %arg10: memref<8x128xbf16, #tpu.memory_space<vmem>>) attributes {dimension_semantics = [#tpu.dimension_semantics<parallel>], iteration_bounds = array<i64: 1>, scalar_prefetch = 0 : i64, scratch_operands = 0 : i64, tpu.core_type = #tpu.core_type<tc>, window_params = [{transform_indices = @transform_0, window_bounds = array<i64: 8, 784>}, {pipeline_mode = #tpu.pipeline_mode<synchronous>, transform_indices = @transform_1, window_bounds = array<i64: 784, 256>}, {pipeline_mode = #tpu.pipeline_mode<synchronous>, transform_indices = @transform_2, window_bounds = array<i64: 1, 256>}, {pipeline_mode = #tpu.pipeline_mode<synchronous>, transform_indices = @transform_3, window_bounds = array<i64: 256, 128>}, {pipeline_mode = #tpu.pipeline_mode<synchronous>, transform_indices = @transform_4, window_bounds = array<i64: 1, 128>}, {pipeline_mode = #tpu.pipeline_mode<synchronous>, transform_indices = @transform_5, window_bounds = array<i64: 128, 64>}, {pipeline_mode = #tpu.pipeline_mode<synchronous>, transform_indices = @transform_6, window_bounds = array<i64: 1, 64>}, {pipeline_mode = #tpu.pipeline_mode<synchronous>, transform_indices = @transform_7, window_bounds = array<i64: 64, 128>}, {pipeline_mode = #tpu.pipeline_mode<synchronous>, transform_indices = @transform_8, window_bounds = array<i64: 1, 128>}, {transform_indices = @transform_9, window_bounds = array<i64: 8, 128>}]} {
    %c0 = arith.constant 0 : index
    %c0_0 = arith.constant 0 : index
    %0 = vector.load %arg1[%c0, %c0_0] : memref<8x784xf32, #tpu.memory_space<vmem>>, vector<8x784xf32>
    %1 = arith.truncf %0 : vector<8x784xf32> to vector<8x784xbf16>
    %c0_1 = arith.constant 0 : index
    %c0_2 = arith.constant 0 : index
    %2 = vector.load %arg2[%c0_1, %c0_2] : memref<784x256xbf16, #tpu.memory_space<vmem>>, vector<784x256xbf16>
    %cst = arith.constant dense<0.000000e+00> : vector<8x256xf32>
    %3 = tpu.matmul %1, %2, %cst {dimension_numbers = #tpu.dot_dimension_numbers<[1], [0], [0], [1], [0, 0, 1, 1], [], []>} : vector<8x784xbf16>, vector<784x256xbf16>, vector<8x256xf32> -> vector<8x256xf32>
    %c0_3 = arith.constant 0 : index
    %c0_4 = arith.constant 0 : index
    %4 = vector.load %arg3[%c0_3, %c0_4] : memref<1x256xf32, #tpu.memory_space<vmem>>, vector<1x256xf32>
    %5 = vector.broadcast %4 : vector<1x256xf32> to vector<8x256xf32>
    %6 = arith.addf %3, %5 : vector<8x256xf32>
    %cst_5 = arith.constant 0.000000e+00 : f32
    %7 = vector.broadcast %cst_5 : f32 to vector<8x256xf32>
    %8 = arith.maximumf %6, %7 : vector<8x256xf32>
    %9 = arith.truncf %8 : vector<8x256xf32> to vector<8x256xbf16>
    %c0_6 = arith.constant 0 : index
    %c0_7 = arith.constant 0 : index
    %10 = vector.load %arg4[%c0_6, %c0_7] : memref<256x128xbf16, #tpu.memory_space<vmem>>, vector<256x128xbf16>
    %cst_8 = arith.constant dense<0.000000e+00> : vector<8x128xf32>
    %11 = tpu.matmul %9, %10, %cst_8 {dimension_numbers = #tpu.dot_dimension_numbers<[1], [0], [0], [1], [0, 0, 1, 1], [], []>} : vector<8x256xbf16>, vector<256x128xbf16>, vector<8x128xf32> -> vector<8x128xf32>
    %c0_9 = arith.constant 0 : index
    %c0_10 = arith.constant 0 : index
    %12 = vector.load %arg5[%c0_9, %c0_10] : memref<1x128xf32, #tpu.memory_space<vmem>>, vector<1x128xf32>
    %13 = vector.broadcast %12 : vector<1x128xf32> to vector<8x128xf32>
    %14 = arith.addf %11, %13 : vector<8x128xf32>
    %cst_11 = arith.constant 0.000000e+00 : f32
    %15 = vector.broadcast %cst_11 : f32 to vector<8x128xf32>
    %16 = arith.maximumf %14, %15 : vector<8x128xf32>
    %17 = arith.truncf %16 : vector<8x128xf32> to vector<8x128xbf16>
    %c0_12 = arith.constant 0 : index
    %c0_13 = arith.constant 0 : index
    %18 = vector.load %arg6[%c0_12, %c0_13] : memref<128x64xbf16, #tpu.memory_space<vmem>>, vector<128x64xbf16>
    %cst_14 = arith.constant dense<0.000000e+00> : vector<8x64xf32>
    %19 = tpu.matmul %17, %18, %cst_14 {dimension_numbers = #tpu.dot_dimension_numbers<[1], [0], [0], [1], [0, 0, 1, 1], [], []>} : vector<8x128xbf16>, vector<128x64xbf16>, vector<8x64xf32> -> vector<8x64xf32>
    %c0_15 = arith.constant 0 : index
    %c0_16 = arith.constant 0 : index
    %20 = vector.load %arg7[%c0_15, %c0_16] : memref<1x64xf32, #tpu.memory_space<vmem>>, vector<1x64xf32>
    %21 = vector.broadcast %20 : vector<1x64xf32> to vector<8x64xf32>
    %22 = arith.addf %19, %21 : vector<8x64xf32>
    %cst_17 = arith.constant 0.000000e+00 : f32
    %23 = vector.broadcast %cst_17 : f32 to vector<8x64xf32>
    %24 = arith.maximumf %22, %23 : vector<8x64xf32>
    %25 = arith.truncf %24 : vector<8x64xf32> to vector<8x64xbf16>
    %c0_18 = arith.constant 0 : index
    %c0_19 = arith.constant 0 : index
    %26 = vector.load %arg8[%c0_18, %c0_19] : memref<64x128xbf16, #tpu.memory_space<vmem>>, vector<64x128xbf16>
    %cst_20 = arith.constant dense<0.000000e+00> : vector<8x128xf32>
    %27 = tpu.matmul %25, %26, %cst_20 {dimension_numbers = #tpu.dot_dimension_numbers<[1], [0], [0], [1], [0, 0, 1, 1], [], []>} : vector<8x64xbf16>, vector<64x128xbf16>, vector<8x128xf32> -> vector<8x128xf32>
    %c0_21 = arith.constant 0 : index
    %c0_22 = arith.constant 0 : index
    %28 = vector.load %arg9[%c0_21, %c0_22] : memref<1x128xf32, #tpu.memory_space<vmem>>, vector<1x128xf32>
    %29 = vector.broadcast %28 : vector<1x128xf32> to vector<8x128xf32>
    %30 = arith.addf %27, %29 : vector<8x128xf32>
    %cst_23 = arith.constant dense<0xFF800000> : vector<8xf32>
    %31 = vector.multi_reduction <maximumf>, %30, %cst_23 [1] : vector<8x128xf32> to vector<8xf32>
    %32 = vector.shape_cast %31 : vector<8xf32> to vector<8x1xf32>
    %33 = vector.broadcast %32 : vector<8x1xf32> to vector<8x128xf32>
    %34 = arith.subf %30, %33 : vector<8x128xf32>
    %35 = math.exp %34 : vector<8x128xf32>
    %cst_24 = arith.constant dense<0.000000e+00> : vector<8xf32>
    %36 = vector.multi_reduction <add>, %35, %cst_24 [1] : vector<8x128xf32> to vector<8xf32>
    %37 = vector.shape_cast %36 : vector<8xf32> to vector<8x1xf32>
    %38 = math.log %37 : vector<8x1xf32>
    %39 = vector.broadcast %38 : vector<8x1xf32> to vector<8x128xf32>
    %40 = arith.subf %34, %39 : vector<8x128xf32>
    %41 = arith.truncf %40 : vector<8x128xf32> to vector<8x128xbf16>
    %c0_25 = arith.constant 0 : index
    %c0_26 = arith.constant 0 : index
    %42 = vector.load %arg10[%c0_25, %c0_26] : memref<8x128xbf16, #tpu.memory_space<vmem>>, vector<8x128xbf16>
    tpu.vector_store %arg10[%c0_25, %c0_26], %41 {strides = array<i32>} : memref<8x128xbf16, #tpu.memory_space<vmem>>, vector<8x128xbf16>,
    return
  }
  func.func @transform_0(%arg0: i32) -> (i32, i32) {
    %c0_i32 = arith.constant 0 : i32
    %c0_i32_0 = arith.constant 0 : i32
    return %arg0, %c0_i32 : i32, i32
  }
  func.func @transform_1(%arg0: i32) -> (i32, i32) {
    %c0_i32 = arith.constant 0 : i32
    %c0_i32_0 = arith.constant 0 : i32
    %c0_i32_1 = arith.constant 0 : i32
    return %c0_i32, %c0_i32_0 : i32, i32
  }
  func.func @transform_2(%arg0: i32) -> (i32, i32) {
    %c0_i32 = arith.constant 0 : i32
    %c0_i32_0 = arith.constant 0 : i32
    %c0_i32_1 = arith.constant 0 : i32
    return %c0_i32, %c0_i32_0 : i32, i32
  }
  func.func @transform_3(%arg0: i32) -> (i32, i32) {
    %c0_i32 = arith.constant 0 : i32
    %c0_i32_0 = arith.constant 0 : i32
    %c0_i32_1 = arith.constant 0 : i32
    return %c0_i32, %c0_i32_0 : i32, i32
  }
  func.func @transform_4(%arg0: i32) -> (i32, i32) {
    %c0_i32 = arith.constant 0 : i32
    %c0_i32_0 = arith.constant 0 : i32
    %c0_i32_1 = arith.constant 0 : i32
    return %c0_i32, %c0_i32_0 : i32, i32
  }
  func.func @transform_5(%arg0: i32) -> (i32, i32) {
    %c0_i32 = arith.constant 0 : i32
    %c0_i32_0 = arith.constant 0 : i32
    %c0_i32_1 = arith.constant 0 : i32
    return %c0_i32, %c0_i32_0 : i32, i32
  }
  func.func @transform_6(%arg0: i32) -> (i32, i32) {
    %c0_i32 = arith.constant 0 : i32
    %c0_i32_0 = arith.constant 0 : i32
    %c0_i32_1 = arith.constant 0 : i32
    return %c0_i32, %c0_i32_0 : i32, i32
  }
  func.func @transform_7(%arg0: i32) -> (i32, i32) {
    %c0_i32 = arith.constant 0 : i32
    %c0_i32_0 = arith.constant 0 : i32
    %c0_i32_1 = arith.constant 0 : i32
    return %c0_i32, %c0_i32_0 : i32, i32
  }
  func.func @transform_8(%arg0: i32) -> (i32, i32) {
    %c0_i32 = arith.constant 0 : i32
    %c0_i32_0 = arith.constant 0 : i32
    %c0_i32_1 = arith.constant 0 : i32
    return %c0_i32, %c0_i32_0 : i32, i32
  }
  func.func @transform_9(%arg0: i32) -> (i32, i32) {
    %c0_i32 = arith.constant 0 : i32
    %c0_i32_0 = arith.constant 0 : i32
    return %arg0, %c0_i32 : i32, i32
  }
}

</mosaic_0001>

<llo_original>
// kernel: mlp_forward.1
$region0: #{mlp_forward.1}
  #allocation0 [shape = 'u32[]', space=smem, size = 0x4, offset = 0x4, fixed_abs, tag = 'smem constant byte address 0x4 - core index']
  #allocation1 [shape = 'u32[144,128]{1,0:T(1,128)}', space=vmem, size = 0x12000, scoped, tag = 'internal scratch']
  %s0 = inlined_call_operand.vmem [shape: f32[8,784], index: 0, kind: input, shape index: {}]
  %s1 = inlined_call_operand.vmem [shape: bf16[784,256], index: 1, kind: input, shape index: {}]
  %s2 = inlined_call_operand.vmem [shape: f32[1,256], index: 2, kind: input, shape index: {}]
  %s3 = inlined_call_operand.hbm [shape: bf16[256,128], index: 3, kind: input, shape index: {}]
  %s4 = inlined_call_operand.vmem [shape: f32[1,128], index: 4, kind: input, shape index: {}]
  %s5 = inlined_call_operand.vmem [shape: bf16[128,64], index: 5, kind: input, shape index: {}]
  %s6 = inlined_call_operand.vmem [shape: f32[1,64], index: 6, kind: input, shape index: {}]
  %s7 = inlined_call_operand.vmem [shape: bf16[64,128], index: 7, kind: input, shape index: {}]
  %s8 = inlined_call_operand.vmem [shape: f32[1,128], index: 8, kind: input, shape index: {}]
  %s9 = inlined_call_operand.hbm [shape: bf16[8,128], index: 9, kind: output, shape index: {}]
  %s10 = sld [smem:[#allocation0]]
  $region50: #{mlp_forward.1} parent=0
    _
  %s12 = ssub.s32 1, %s10
  %s13 = scalar_select 0, %s12, %s10
  $region1: #{mlp_forward.1} parent=0
    #allocation2 [shape = 'u8[65536]{0}', space=vmem, size = 0x10000, scoped, tag = 'input window, operand 3, single buffered']
    #allocation3 [shape = 's32[1]{0}', space=sflag, size = 0x4, scoped, tag = 'scoped memory for mlp_forward.1']
    #allocation4 [shape = 's32[1]{0}', space=sflag, size = 0x4, scoped, tag = 'scoped memory for mlp_forward.1']
    #allocation5 [shape = 'u8[2048]{0}', space=vmem, size = 0x800, scoped, tag = 'output window, operand 0, single buffered']
    %14 = vsyncpa [#allocation3], 0
    %15 = vsyncpa [#allocation4], 0
    // Predicated region
    $region2: #{mlp_forward.1} parent=1 // pred_check
      _
    $region3: #{mlp_forward.1} parent=1 // pred_check_branch
      %17 = sbr.rel (0) target = $region5
    $region4: #{mlp_forward.1} parent=1 // pred_region
      _
    $region5: #{mlp_forward.1} parent=1 // pred_fallthru
      _
    // Predicated region
    $region6: #{mlp_forward.1} parent=1 // pred_check
      _
    $region7: #{mlp_forward.1} parent=1 // pred_check_branch
      %19 = sbr.rel (0) target = $region9
    $region8: #{mlp_forward.1} parent=1 // pred_region
      _
    $region9: #{mlp_forward.1} parent=1 // pred_fallthru
      _
    // Predicated region
    $region10: #{mlp_forward.1} parent=1 // pred_check
      _
    $region11: #{mlp_forward.1} parent=1 // pred_check_branch
      %21 = sbr.rel (0) target = $region13
    $region12: #{mlp_forward.1} parent=1 // pred_region
      _
    $region13: #{mlp_forward.1} parent=1 // pred_fallthru
      _
    // Predicated region
    $region14: #{mlp_forward.1} parent=1 // pred_check
      _
    $region15: #{mlp_forward.1} parent=1 // pred_check_branch
      %23 = sbr.rel (0) target = $region17
    $region16: #{mlp_forward.1} parent=1 // pred_region
      %s25 = ssub.s32 2048, 2048
      %26 = vsyncadd [#allocation3], %s25
      %s27 = sshll.u32 [#allocation2], 4
      %s28 = int_to_ptr.vmem [resolvable:$true] %s27
      %33 = dma.hbm_to_vmem [thread:$0]  %s3, 2048, %s28, [#allocation3], 64, 64, 4
    $region17: #{mlp_forward.1} parent=1 // pred_fallthru
      _
    // Predicated region
    $region18: #{mlp_forward.1} parent=1 // pred_check
      _
    $region19: #{mlp_forward.1} parent=1 // pred_check_branch
      %35 = sbr.rel (0) target = $region21
    $region20: #{mlp_forward.1} parent=1 // pred_region
      _
    $region21: #{mlp_forward.1} parent=1 // pred_fallthru
      _
    // Predicated region
    $region22: #{mlp_forward.1} parent=1 // pred_check
      _
    $region23: #{mlp_forward.1} parent=1 // pred_check_branch
      %37 = sbr.rel (0) target = $region25
    $region24: #{mlp_forward.1} parent=1 // pred_region
      _
    $region25: #{mlp_forward.1} parent=1 // pred_fallthru
      _
    // Predicated region
    $region26: #{mlp_forward.1} parent=1 // pred_check
      _
    $region27: #{mlp_forward.1} parent=1 // pred_check_branch
      %39 = sbr.rel (0) target = $region29
    $region28: #{mlp_forward.1} parent=1 // pred_region
      _
    $region29: #{mlp_forward.1} parent=1 // pred_fallthru
      _
    // Predicated region
    $region30: #{mlp_forward.1} parent=1 // pred_check
      _
    $region31: #{mlp_forward.1} parent=1 // pred_check_branch
      %41 = sbr.rel (0) target = $region33
    $region32: #{mlp_forward.1} parent=1 // pred_region
      _
    $region33: #{mlp_forward.1} parent=1 // pred_fallthru
      _
    // Predicated region
    $region34: #{mlp_forward.1} parent=1 // pred_check
      _
    $region35: #{mlp_forward.1} parent=1 // pred_check_branch
      %43 = sbr.rel (0) target = $region37
    $region36: #{mlp_forward.1} parent=1 // pred_region
      _
    $region37: #{mlp_forward.1} parent=1 // pred_fallthru
      _
    // Predicated region
    $region38: #{mlp_forward.1} parent=1 // pred_check
      _
    $region39: #{mlp_forward.1} parent=1 // pred_check_branch
      %45 = sbr.rel (0) target = $region41
    $region40: #{mlp_forward.1} parent=1 // pred_region
      %46 = dma.done [#allocation3], 2048
    $region41: #{mlp_forward.1} parent=1 // pred_fallthru
      _
    %v48 = vld [vmem:[%s0] sm:$0xff]
    %v49 = vld [vmem:[%s0 + $0x8] sm:$0xff]
    %v50 = vld [vmem:[%s0 + $0x10] sm:$0xff]
    %v51 = vld [vmem:[%s0 + $0x18] sm:$0xff]
    %v52 = vld [vmem:[%s0 + $0x20] sm:$0xff]
    %v53 = vld [vmem:[%s0 + $0x28] sm:$0xff]
    %v54 = vld [vmem:[%s0 + $0x30] sm:$0xff]
    %v55 = vpack.c.bf16 %v48, %v48
    %v56 = vpack.c.bf16 %v49, %v49
    %v57 = vpack.c.bf16 %v50, %v50
    %v58 = vpack.c.bf16 %v51, %v51
    %v59 = vpack.c.bf16 %v52, %v52
    %v60 = vpack.c.bf16 %v53, %v53
    %v61 = vpack.c.bf16 %v54, %v54
    %v62 = vld [vmem:[%s1] sm:$0xff]
    %v63 = vld [vmem:[%s1 + $0x8] sm:$0xff]
    %v64 = vld [vmem:[%s1 + $0x10] sm:$0xff]
    %v65 = vld [vmem:[%s1 + $0x18] sm:$0xff]
    %v66 = vld [vmem:[%s1 + $0x20] sm:$0xff]
    %v67 = vld [vmem:[%s1 + $0x28] sm:$0xff]
    %v68 = vld [vmem:[%s1 + $0x30] sm:$0xff]
    %v69 = vld [vmem:[%s1 + $0x38] sm:$0xff]
    %v70 = vld [vmem:[%s1 + $0x40] sm:$0xff]
    %v71 = vld [vmem:[%s1 + $0x48] sm:$0xff]
    %v72 = vld [vmem:[%s1 + $0x50] sm:$0xff]
    %v73 = vld [vmem:[%s1 + $0x58] sm:$0xff]
    %v74 = vld [vmem:[%s1 + $0x60] sm:$0xff]
    %v75 = vld [vmem:[%s1 + $0x68] sm:$0xff]
    %v76 = vld [vmem:[%s1 + $0x70] sm:$0xff]
    %v77 = vld [vmem:[%s1 + $0x78] sm:$0xff]
    %v78 = vld [vmem:[%s1 + $0x80] sm:$0xff]
    %v79 = vld [vmem:[%s1 + $0x88] sm:$0xff]
    %v80 = vld [vmem:[%s1 + $0x90] sm:$0xff]
    %v81 = vld [vmem:[%s1 + $0x98] sm:$0xff]
    %v82 = vld [vmem:[%s1 + $0xa0] sm:$0xff]
    %v83 = vld [vmem:[%s1 + $0xa8] sm:$0xff]
    %v84 = vld [vmem:[%s1 + $0xb0] sm:$0xff]
    %v85 = vld [vmem:[%s1 + $0xb8] sm:$0xff]
    %v86 = vld [vmem:[%s1 + $0xc0] sm:$0xff]
    %v87 = vld [vmem:[%s1 + $0xc8] sm:$0xff]
    %v88 = vld [vmem:[%s1 + $0xd0] sm:$0xff]
    %v89 = vld [vmem:[%s1 + $0xd8] sm:$0xff]
    %v90 = vld [vmem:[%s1 + $0xe0] sm:$0xff]
    %v91 = vld [vmem:[%s1 + $0xe8] sm:$0xff]
    %v92 = vld [vmem:[%s1 + $0xf0] sm:$0xff]
    %v93 = vld [vmem:[%s1 + $0xf8] sm:$0xff]
    %v94 = vld [vmem:[%s1 + $0x100] sm:$0xff]
    %v95 = vld [vmem:[%s1 + $0x108] sm:$0xff]
    %v96 = vld [vmem:[%s1 + $0x110] sm:$0xff]
    %v97 = vld [vmem:[%s1 + $0x118] sm:$0xff]
    %v98 = vld [vmem:[%s1 + $0x120] sm:$0xff]
    %v99 = vld [vmem:[%s1 + $0x128] sm:$0xff]
    %v100 = vld [vmem:[%s1 + $0x130] sm:$0xff]
    %v101 = vld [vmem:[%s1 + $0x138] sm:$0xff]
    %v102 = vld [vmem:[%s1 + $0x140] sm:$0xff]
    %v103 = vld [vmem:[%s1 + $0x148] sm:$0xff]
    %v104 = vld [vmem:[%s1 + $0x150] sm:$0xff]
    %v105 = vld [vmem:[%s1 + $0x158] sm:$0xff]
    %v106 = vld [vmem:[%s1 + $0x160] sm:$0xff]
    %v107 = vld [vmem:[%s1 + $0x168] sm:$0xff]
    %v108 = vld [vmem:[%s1 + $0x170] sm:$0xff]
    %v109 = vld [vmem:[%s1 + $0x178] sm:$0xff]
    %v110 = vld [vmem:[%s1 + $0x180] sm:$0xff]
    %v111 = vld [vmem:[%s1 + $0x188] sm:$0xff]
    %v112 = vld [vmem:[%s1 + $0x190] sm:$0xff]
    %v113 = vld [vmem:[%s1 + $0x198] sm:$0xff]
    %v114 = vld [vmem:[%s1 + $0x1a0] sm:$0xff]
    %v115 = vld [vmem:[%s1 + $0x1a8] sm:$0xff]
    %v116 = vld [vmem:[%s1 + $0x1b0] sm:$0xff]
    %v117 = vld [vmem:[%s1 + $0x1b8] sm:$0xff]
    %v118 = vld [vmem:[%s1 + $0x1c0] sm:$0xff]
    %v119 = vld [vmem:[%s1 + $0x1c8] sm:$0xff]
    %v120 = vld [vmem:[%s1 + $0x1d0] sm:$0xff]
    %v121 = vld [vmem:[%s1 + $0x1d8] sm:$0xff]
    %v122 = vld [vmem:[%s1 + $0x1e0] sm:$0xff]
    %v123 = vld [vmem:[%s1 + $0x1e8] sm:$0xff]
    %v124 = vld [vmem:[%s1 + $0x1f0] sm:$0xff]
    %v125 = vld [vmem:[%s1 + $0x1f8] sm:$0xff]
    %v126 = vld [vmem:[%s1 + $0x200] sm:$0xff]
    %v127 = vld [vmem:[%s1 + $0x208] sm:$0xff]
    %v128 = vld [vmem:[%s1 + $0x210] sm:$0xff]
    %v129 = vld [vmem:[%s1 + $0x218] sm:$0xff]
    %v130 = vld [vmem:[%s1 + $0x220] sm:$0xff]
    %v131 = vld [vmem:[%s1 + $0x228] sm:$0xff]
    %v132 = vld [vmem:[%s1 + $0x230] sm:$0xff]
    %v133 = vld [vmem:[%s1 + $0x238] sm:$0xff]
    %v134 = vld [vmem:[%s1 + $0x240] sm:$0xff]
    %v135 = vld [vmem:[%s1 + $0x248] sm:$0xff]
    %v136 = vld [vmem:[%s1 + $0x250] sm:$0xff]
    %v137 = vld [vmem:[%s1 + $0x258] sm:$0xff]
    %v138 = vld [vmem:[%s1 + $0x260] sm:$0xff]
    %v139 = vld [vmem:[%s1 + $0x268] sm:$0xff]
    %v140 = vld [vmem:[%s1 + $0x270] sm:$0xff]
    %v141 = vld [vmem:[%s1 + $0x278] sm:$0xff]
    %v142 = vld [vmem:[%s1 + $0x280] sm:$0xff]
    %v143 = vld [vmem:[%s1 + $0x288] sm:$0xff]
    %v144 = vld [vmem:[%s1 + $0x290] sm:$0xff]
    %v145 = vld [vmem:[%s1 + $0x298] sm:$0xff]
    %v146 = vld [vmem:[%s1 + $0x2a0] sm:$0xff]
    %v147 = vld [vmem:[%s1 + $0x2a8] sm:$0xff]
    %v148 = vld [vmem:[%s1 + $0x2b0] sm:$0xff]
    %v149 = vld [vmem:[%s1 + $0x2b8] sm:$0xff]
    %v150 = vld [vmem:[%s1 + $0x2c0] sm:$0xff]
    %v151 = vld [vmem:[%s1 + $0x2c8] sm:$0xff]
    %v152 = vld [vmem:[%s1 + $0x2d0] sm:$0xff]
    %v153 = vld [vmem:[%s1 + $0x2d8] sm:$0xff]
    %v154 = vld [vmem:[%s1 + $0x2e0] sm:$0xff]
    %v155 = vld [vmem:[%s1 + $0x2e8] sm:$0xff]
    %v156 = vld [vmem:[%s1 + $0x2f0] sm:$0xff]
    %v157 = vld [vmem:[%s1 + $0x2f8] sm:$0xff]
    %v158 = vld [vmem:[%s1 + $0x300] sm:$0xff]
    %v159 = vld [vmem:[%s1 + $0x308] sm:$0xff]
    %v160 = vld [vmem:[%s2] sm:$0x3]
    %v162 = vlaneseq
    %v163 = vshrl.u32 %v162, 7
    %v164 = vsub.s32 0, %v163
    %v165 = vrot.slane %v160, %v164
    %v166 = vlaneseq
    %v167 = vshrl.u32 %v166, 7
    %v168 = vsub.s32 1, %v167
    %v169 = vrot.slane %v160, %v168
    %v270 = vunpack.c.l.b16 %v62
    %v271 = vunpack.c.h.b16 %v62
    %v272 = vunpack.c.l.b16 %v63
    %v273 = vunpack.c.h.b16 %v63
    %v274 = vunpack.c.l.b16 %v64
    %v275 = vunpack.c.h.b16 %v64
    %v276 = vunpack.c.l.b16 %v65
    %v277 = vunpack.c.h.b16 %v65
    %v278 = vunpack.c.l.b16 %v66
    %v279 = vunpack.c.h.b16 %v66
    %v280 = vunpack.c.l.b16 %v67
    %v281 = vunpack.c.h.b16 %v67
    %v282 = vunpack.c.l.b16 %v68
    %v283 = vunpack.c.h.b16 %v68
    %v284 = vunpack.c.l.b16 %v69
    %v285 = vunpack.c.h.b16 %v69
    %v286 = vunpack.c.l.b16 %v70
    %v287 = vunpack.c.h.b16 %v70
    %v288 = vunpack.c.l.b16 %v71
    %v289 = vunpack.c.h.b16 %v71
    %v290 = vunpack.c.l.b16 %v72
    %v291 = vunpack.c.h.b16 %v72
    %v292 = vunpack.c.l.b16 %v73
    %v293 = vunpack.c.h.b16 %v73
    %v294 = vunpack.c.l.b16 %v74
    %v295 = vunpack.c.h.b16 %v74
    %v296 = vunpack.c.l.b16 %v75
    %v297 = vunpack.c.h.b16 %v75
    %v298 = vunpack.c.l.b16 %v76
    %v299 = vunpack.c.h.b16 %v76
    %v300 = vunpack.c.l.b16 %v77
    %v301 = vunpack.c.h.b16 %v77
    %v302 = vunpack.c.l.b16 %v78
    %v303 = vunpack.c.h.b16 %v78
    %v304 = vunpack.c.l.b16 %v79
    %v305 = vunpack.c.h.b16 %v79
    %v306 = vunpack.c.l.b16 %v80
    %v307 = vunpack.c.h.b16 %v80
    %v308 = vunpack.c.l.b16 %v81
    %v309 = vunpack.c.h.b16 %v81
    %v310 = vunpack.c.l.b16 %v82
    %v311 = vunpack.c.h.b16 %v82
    %v312 = vunpack.c.l.b16 %v83
    %v313 = vunpack.c.h.b16 %v83
    %v314 = vunpack.c.l.b16 %v84
    %v315 = vunpack.c.h.b16 %v84
    %v316 = vunpack.c.l.b16 %v85
    %v317 = vunpack.c.h.b16 %v85
    %v318 = vunpack.c.l.b16 %v86
    %v319 = vunpack.c.h.b16 %v86
    %v320 = vunpack.c.l.b16 %v87
    %v321 = vunpack.c.h.b16 %v87
    %v322 = vunpack.c.l.b16 %v88
    %v323 = vunpack.c.h.b16 %v88
    %v324 = vunpack.c.l.b16 %v89
    %v325 = vunpack.c.h.b16 %v89
    %v326 = vunpack.c.l.b16 %v90
    %v327 = vunpack.c.h.b16 %v90
    %v328 = vunpack.c.l.b16 %v91
    %v329 = vunpack.c.h.b16 %v91
    %v330 = vunpack.c.l.b16 %v92
    %v331 = vunpack.c.h.b16 %v92
    %v332 = vunpack.c.l.b16 %v93
    %v333 = vunpack.c.h.b16 %v93
    %v334 = vunpack.c.l.b16 %v94
    %v335 = vunpack.c.h.b16 %v94
    %v336 = vunpack.c.l.b16 %v95
    %v337 = vunpack.c.h.b16 %v95
    %v338 = vunpack.c.l.b16 %v96
    %v339 = vunpack.c.h.b16 %v96
    %v340 = vunpack.c.l.b16 %v97
    %v341 = vunpack.c.h.b16 %v97
    %v342 = vunpack.c.l.b16 %v98
    %v343 = vunpack.c.h.b16 %v98
    %v344 = vunpack.c.l.b16 %v99
    %v345 = vunpack.c.h.b16 %v99
    %v346 = vunpack.c.l.b16 %v100
    %v347 = vunpack.c.h.b16 %v100
    %v348 = vunpack.c.l.b16 %v101
    %v349 = vunpack.c.h.b16 %v101
    %v350 = vunpack.c.l.b16 %v102
    %v351 = vunpack.c.h.b16 %v102
    %v352 = vunpack.c.l.b16 %v103
    %v353 = vunpack.c.h.b16 %v103
    %v354 = vunpack.c.l.b16 %v104
    %v355 = vunpack.c.h.b16 %v104
    %v356 = vunpack.c.l.b16 %v105
    %v357 = vunpack.c.h.b16 %v105
    %v358 = vunpack.c.l.b16 %v106
    %v359 = vunpack.c.h.b16 %v106
    %v360 = vunpack.c.l.b16 %v107
    %v361 = vunpack.c.h.b16 %v107
    %v362 = vunpack.c.l.b16 %v108
    %v363 = vunpack.c.h.b16 %v108
    %v364 = vunpack.c.l.b16 %v109
    %v365 = vunpack.c.h.b16 %v109
    %v366 = vunpack.c.l.b16 %v110
    %v367 = vunpack.c.h.b16 %v110
    %v368 = vunpack.c.l.b16 %v111
    %v369 = vunpack.c.h.b16 %v111
    %v370 = vunpack.c.l.b16 %v112
    %v371 = vunpack.c.h.b16 %v112
    %v372 = vunpack.c.l.b16 %v113
    %v373 = vunpack.c.h.b16 %v113
    %v374 = vunpack.c.l.b16 %v114
    %v375 = vunpack.c.h.b16 %v114
    %v376 = vunpack.c.l.b16 %v115
    %v377 = vunpack.c.h.b16 %v115
    %v378 = vunpack.c.l.b16 %v116
    %v379 = vunpack.c.h.b16 %v116
    %v380 = vunpack.c.l.b16 %v117
    %v381 = vunpack.c.h.b16 %v117
    %v382 = vunpack.c.l.b16 %v118
    %v383 = vunpack.c.h.b16 %v118
    %v384 = vunpack.c.l.b16 %v119
    %v385 = vunpack.c.h.b16 %v119
    %v386 = vunpack.c.l.b16 %v120
    %v387 = vunpack.c.h.b16 %v120
    %v388 = vunpack.c.l.b16 %v121
    %v389 = vunpack.c.h.b16 %v121
    %v390 = vunpack.c.l.b16 %v122
    %v391 = vunpack.c.h.b16 %v122
    %v392 = vunpack.c.l.b16 %v123
    %v393 = vunpack.c.h.b16 %v123
    %v394 = vunpack.c.l.b16 %v124
    %v395 = vunpack.c.h.b16 %v124
    %v396 = vunpack.c.l.b16 %v125
    %v397 = vunpack.c.h.b16 %v125
    %v398 = vunpack.c.l.b16 %v126
    %v399 = vunpack.c.h.b16 %v126
    %v400 = vunpack.c.l.b16 %v127
    %v401 = vunpack.c.h.b16 %v127
    %v402 = vunpack.c.l.b16 %v128
    %v403 = vunpack.c.h.b16 %v128
    %v404 = vunpack.c.l.b16 %v129
    %v405 = vunpack.c.h.b16 %v129
    %v406 = vunpack.c.l.b16 %v130
    %v407 = vunpack.c.h.b16 %v130
    %v408 = vunpack.c.l.b16 %v131
    %v409 = vunpack.c.h.b16 %v131
    %v410 = vunpack.c.l.b16 %v132
    %v411 = vunpack.c.h.b16 %v132
    %v412 = vunpack.c.l.b16 %v133
    %v413 = vunpack.c.h.b16 %v133
    %v414 = vunpack.c.l.b16 %v134
    %v415 = vunpack.c.h.b16 %v134
    %v416 = vunpack.c.l.b16 %v135
    %v417 = vunpack.c.h.b16 %v135
    %v418 = vunpack.c.l.b16 %v136
    %v419 = vunpack.c.h.b16 %v136
    %v420 = vunpack.c.l.b16 %v137
    %v421 = vunpack.c.h.b16 %v137
    %v422 = vunpack.c.l.b16 %v138
    %v423 = vunpack.c.h.b16 %v138
    %v424 = vunpack.c.l.b16 %v139
    %v425 = vunpack.c.h.b16 %v139
    %v426 = vunpack.c.l.b16 %v140
    %v427 = vunpack.c.h.b16 %v140
    %v428 = vunpack.c.l.b16 %v141
    %v429 = vunpack.c.h.b16 %v141
    %v430 = vunpack.c.l.b16 %v142
    %v431 = vunpack.c.h.b16 %v142
    %v432 = vunpack.c.l.b16 %v143
    %v433 = vunpack.c.h.b16 %v143
    %v434 = vunpack.c.l.b16 %v144
    %v435 = vunpack.c.h.b16 %v144
    %v436 = vunpack.c.l.b16 %v145
    %v437 = vunpack.c.h.b16 %v145
    %v438 = vunpack.c.l.b16 %v146
    %v439 = vunpack.c.h.b16 %v146
    %v440 = vunpack.c.l.b16 %v147
    %v441 = vunpack.c.h.b16 %v147
    %v442 = vunpack.c.l.b16 %v148
    %v443 = vunpack.c.h.b16 %v148
    %v444 = vunpack.c.l.b16 %v149
    %v445 = vunpack.c.h.b16 %v149
    %v446 = vunpack.c.l.b16 %v150
    %v447 = vunpack.c.h.b16 %v150
    %v448 = vunpack.c.l.b16 %v151
    %v449 = vunpack.c.h.b16 %v151
    %v450 = vunpack.c.l.b16 %v152
    %v451 = vunpack.c.h.b16 %v152
    %v452 = vunpack.c.l.b16 %v153
    %v453 = vunpack.c.h.b16 %v153
    %v454 = vunpack.c.l.b16 %v154
    %v455 = vunpack.c.h.b16 %v154
    %v456 = vunpack.c.l.b16 %v155
    %v457 = vunpack.c.h.b16 %v155
    %v458 = vunpack.c.l.b16 %v156
    %v459 = vunpack.c.h.b16 %v156
    %v460 = vunpack.c.l.b16 %v157
    %v461 = vunpack.c.h.b16 %v157
    %v462 = vunpack.c.l.b16 %v158
    %v463 = vunpack.c.h.b16 %v158
    %v464 = vunpack.c.l.b16 %v159
    %v465 = vunpack.c.h.b16 %v159
    %v466 = vpack.c.b16 %v272, %v270
    %v467 = vpack.c.b16 %v273, %v271
    %v468 = vpack.c.b16 %v276, %v274
    %v469 = vpack.c.b16 %v277, %v275
    %v470 = vpack.c.b16 %v280, %v278
    %v471 = vpack.c.b16 %v281, %v279
    %v472 = vpack.c.b16 %v284, %v282
    %v473 = vpack.c.b16 %v285, %v283
    %v474 = vpack.c.b16 %v288, %v286
    %v475 = vpack.c.b16 %v289, %v287
    %v476 = vpack.c.b16 %v292, %v290
    %v477 = vpack.c.b16 %v293, %v291
    %v478 = vpack.c.b16 %v296, %v294
    %v479 = vpack.c.b16 %v297, %v295
    %v480 = vpack.c.b16 %v300, %v298
    %v481 = vpack.c.b16 %v301, %v299
    %v482 = vpack.c.b16 %v304, %v302
    %v483 = vpack.c.b16 %v305, %v303
    %v484 = vpack.c.b16 %v308, %v306
    %v485 = vpack.c.b16 %v309, %v307
    %v486 = vpack.c.b16 %v312, %v310
    %v487 = vpack.c.b16 %v313, %v311
    %v488 = vpack.c.b16 %v316, %v314
    %v489 = vpack.c.b16 %v317, %v315
    %v490 = vpack.c.b16 %v320, %v318
    %v491 = vpack.c.b16 %v321, %v319
    %v492 = vpack.c.b16 %v324, %v322
    %v493 = vpack.c.b16 %v325, %v323
    %v494 = vpack.c.b16 %v328, %v326
    %v495 = vpack.c.b16 %v329, %v327
    %v496 = vpack.c.b16 %v332, %v330
    %v497 = vpack.c.b16 %v333, %v331
    %v498 = vpack.c.b16 %v336, %v334
    %v499 = vpack.c.b16 %v337, %v335
    %v500 = vpack.c.b16 %v340, %v338
    %v501 = vpack.c.b16 %v341, %v339
    %v502 = vpack.c.b16 %v344, %v342
    %v503 = vpack.c.b16 %v345, %v343
    %v504 = vpack.c.b16 %v348, %v346
    %v505 = vpack.c.b16 %v349, %v347
    %v506 = vpack.c.b16 %v352, %v350
    %v507 = vpack.c.b16 %v353, %v351
    %v508 = vpack.c.b16 %v356, %v354
    %v509 = vpack.c.b16 %v357, %v355
    %v510 = vpack.c.b16 %v360, %v358
    %v511 = vpack.c.b16 %v361, %v359
    %v512 = vpack.c.b16 %v364, %v362
    %v513 = vpack.c.b16 %v365, %v363
    %v514 = vpack.c.b16 %v368, %v366
    %v515 = vpack.c.b16 %v369, %v367
    %v516 = vpack.c.b16 %v372, %v370
    %v517 = vpack.c.b16 %v373, %v371
    %v518 = vpack.c.b16 %v376, %v374
    %v519 = vpack.c.b16 %v377, %v375
    %v520 = vpack.c.b16 %v380, %v378
    %v521 = vpack.c.b16 %v381, %v379
    %v522 = vpack.c.b16 %v384, %v382
    %v523 = vpack.c.b16 %v385, %v383
    %v524 = vpack.c.b16 %v388, %v386
    %v525 = vpack.c.b16 %v389, %v387
    %v526 = vpack.c.b16 %v392, %v390
    %v527 = vpack.c.b16 %v393, %v391
    %v528 = vpack.c.b16 %v396, %v394
    %v529 = vpack.c.b16 %v397, %v395
    %v530 = vpack.c.b16 %v400, %v398
    %v531 = vpack.c.b16 %v401, %v399
    %v532 = vpack.c.b16 %v404, %v402
    %v533 = vpack.c.b16 %v405, %v403
    %v534 = vpack.c.b16 %v408, %v406
    %v535 = vpack.c.b16 %v409, %v407
    %v536 = vpack.c.b16 %v412, %v410
    %v537 = vpack.c.b16 %v413, %v411
    %v538 = vpack.c.b16 %v416, %v414
    %v539 = vpack.c.b16 %v417, %v415
    %v540 = vpack.c.b16 %v420, %v418
    %v541 = vpack.c.b16 %v421, %v419
    %v542 = vpack.c.b16 %v424, %v422
    %v543 = vpack.c.b16 %v425, %v423
    %v544 = vpack.c.b16 %v428, %v426
    %v545 = vpack.c.b16 %v429, %v427
    %v546 = vpack.c.b16 %v432, %v430
    %v547 = vpack.c.b16 %v433, %v431
    %v548 = vpack.c.b16 %v436, %v434
    %v549 = vpack.c.b16 %v437, %v435
    %v550 = vpack.c.b16 %v440, %v438
    %v551 = vpack.c.b16 %v441, %v439
    %v552 = vpack.c.b16 %v444, %v442
    %v553 = vpack.c.b16 %v445, %v443
    %v554 = vpack.c.b16 %v448, %v446
    %v555 = vpack.c.b16 %v449, %v447
    %v556 = vpack.c.b16 %v452, %v450
    %v557 = vpack.c.b16 %v453, %v451
    %v558 = vpack.c.b16 %v456, %v454
    %v559 = vpack.c.b16 %v457, %v455
    %v560 = vpack.c.b16 %v460, %v458
    %v561 = vpack.c.b16 %v461, %v459
    %v562 = vpack.c.b16 %v464, %v462
    %v563 = vpack.c.b16 %v465, %v463
    %vm662 = vcmask 130048
    %v664 = vsel %vm662, %v61, 0
    %666 = vmatprep.subr.bf16.mxu0 %v467
    %667 = vmatpush1.bf16.msra.mxu0 %v466
    %668 = vmatprep.subr.bf16.mxu0 %v469
    %669 = vmatpush1.bf16.msra.mxu0 %v468
    %670 = vmatprep.subr.bf16.mxu0 %v471
    %671 = vmatpush1.bf16.msra.mxu0 %v470
    %672 = vmatprep.subr.bf16.mxu0 %v473
    %673 = vmatpush1.bf16.msra.mxu0 %v472
    %674 = vmatprep.subr.bf16.mxu0 %v475
    %675 = vmatpush1.bf16.msra.mxu0 %v474
    %676 = vmatprep.subr.bf16.mxu0 %v477
    %677 = vmatpush1.bf16.msra.mxu0 %v476
    %678 = vmatprep.subr.bf16.mxu0 %v479
    %679 = vmatpush1.bf16.msra.mxu0 %v478
    %680 = vmatprep.subr.bf16.mxu0 %v481
    %681 = vmatpush1.bf16.msra.mxu0 %v480
    %682 = vmatprep.subr.bf16.mxu0 %v483
    %683 = vmatpush1.bf16.msra.mxu0 %v482
    %684 = vmatprep.subr.bf16.mxu0 %v485
    %685 = vmatpush1.bf16.msra.mxu0 %v484
    %686 = vmatprep.subr.bf16.mxu0 %v487
    %687 = vmatpush1.bf16.msra.mxu0 %v486
    %688 = vmatprep.subr.bf16.mxu0 %v489
    %689 = vmatpush1.bf16.msra.mxu0 %v488
    %690 = vmatprep.subr.bf16.mxu0 %v491
    %691 = vmatpush1.bf16.msra.mxu0 %v490
    %692 = vmatprep.subr.bf16.mxu0 %v493
    %693 = vmatpush1.bf16.msra.mxu0 %v492
    %694 = vmatprep.subr.bf16.mxu0 %v495
    %695 = vmatpush1.bf16.msra.mxu0 %v494
    %696 = vmatprep.subr.bf16.mxu0 %v497
    %697 = vmatpush1.bf16.msra.mxu0 %v496
    %698 = vmatprep.mubr.bf16.mxu0 %v56
    %699 = vmatmul.mubr.bf16.gmra.mrb[0].mxu0 %v55
    %v700 = vpop.f32.mrb[0].mxu0
    %v701 = vadd.f32 %v165, %v700
    %v702 = vpop.f32.mrb[0].mxu0
    %v703 = vadd.f32 %v169, %v702
    %v704 = vpop.f32.mrb[0].mxu0
    %v705 = vpop.f32.mrb[0].mxu0
    %706 = vdwg.mxu0
    %707 = vmatprep.subr.bf16.mxu0 %v499
    %708 = vmatpush1.bf16.msra.mxu0 %v498
    %709 = vmatprep.subr.bf16.mxu0 %v501
    %710 = vmatpush1.bf16.msra.mxu0 %v500
    %711 = vmatprep.subr.bf16.mxu0 %v503
    %712 = vmatpush1.bf16.msra.mxu0 %v502
    %713 = vmatprep.subr.bf16.mxu0 %v505
    %714 = vmatpush1.bf16.msra.mxu0 %v504
    %715 = vmatprep.subr.bf16.mxu0 %v507
    %716 = vmatpush1.bf16.msra.mxu0 %v506
    %717 = vmatprep.subr.bf16.mxu0 %v509
    %718 = vmatpush1.bf16.msra.mxu0 %v508
    %719 = vmatprep.subr.bf16.mxu0 %v511
    %720 = vmatpush1.bf16.msra.mxu0 %v510
    %721 = vmatprep.subr.bf16.mxu0 %v513
    %722 = vmatpush1.bf16.msra.mxu0 %v512
    %723 = vmatprep.subr.bf16.mxu0 %v515
    %724 = vmatpush1.bf16.msra.mxu0 %v514
    %725 = vmatprep.subr.bf16.mxu0 %v517
    %726 = vmatpush1.bf16.msra.mxu0 %v516
    %727 = vmatprep.subr.bf16.mxu0 %v519
    %728 = vmatpush1.bf16.msra.mxu0 %v518
    %729 = vmatprep.subr.bf16.mxu0 %v521
    %730 = vmatpush1.bf16.msra.mxu0 %v520
    %731 = vmatprep.subr.bf16.mxu0 %v523
    %732 = vmatpush1.bf16.msra.mxu0 %v522
    %733 = vmatprep.subr.bf16.mxu0 %v525
    %734 = vmatpush1.bf16.msra.mxu0 %v524
    %735 = vmatprep.subr.bf16.mxu0 %v527
    %736 = vmatpush1.bf16.msra.mxu0 %v526
    %737 = vmatprep.subr.bf16.mxu0 %v529
    %738 = vmatpush1.bf16.msra.mxu0 %v528
    %739 = vmatprep.mubr.bf16.mxu0 %v58
    %740 = vmatmul.mubr.bf16.gmra.mrb[0].mxu0 %v57
    %v741 = vpop.f32.mrb[0].mxu0
    %v742 = vadd.f32 %v701, %v741
    %v743 = vpop.f32.mrb[0].mxu0
    %v744 = vadd.f32 %v703, %v743
    %v745 = vpop.f32.mrb[0].mxu0
    %v746 = vpop.f32.mrb[0].mxu0
    %747 = vdwg.mxu0
    %748 = vmatprep.subr.bf16.mxu0 %v531
    %749 = vmatpush1.bf16.msra.mxu0 %v530
    %750 = vmatprep.subr.bf16.mxu0 %v533
    %751 = vmatpush1.bf16.msra.mxu0 %v532
    %752 = vmatprep.subr.bf16.mxu0 %v535
    %753 = vmatpush1.bf16.msra.mxu0 %v534
    %754 = vmatprep.subr.bf16.mxu0 %v537
    %755 = vmatpush1.bf16.msra.mxu0 %v536
    %756 = vmatprep.subr.bf16.mxu0 %v539
    %757 = vmatpush1.bf16.msra.mxu0 %v538
    %758 = vmatprep.subr.bf16.mxu0 %v541
    %759 = vmatpush1.bf16.msra.mxu0 %v540
    %760 = vmatprep.subr.bf16.mxu0 %v543
    %761 = vmatpush1.bf16.msra.mxu0 %v542
    %762 = vmatprep.subr.bf16.mxu0 %v545
    %763 = vmatpush1.bf16.msra.mxu0 %v544
    %764 = vmatprep.subr.bf16.mxu0 %v547
    %765 = vmatpush1.bf16.msra.mxu0 %v546
    %766 = vmatprep.subr.bf16.mxu0 %v549
    %767 = vmatpush1.bf16.msra.mxu0 %v548
    %768 = vmatprep.subr.bf16.mxu0 %v551
    %769 = vmatpush1.bf16.msra.mxu0 %v550
    %770 = vmatprep.subr.bf16.mxu0 %v553
    %771 = vmatpush1.bf16.msra.mxu0 %v552
    %772 = vmatprep.subr.bf16.mxu0 %v555
    %773 = vmatpush1.bf16.msra.mxu0 %v554
    %774 = vmatprep.subr.bf16.mxu0 %v557
    %775 = vmatpush1.bf16.msra.mxu0 %v556
    %776 = vmatprep.subr.bf16.mxu0 %v559
    %777 = vmatpush1.bf16.msra.mxu0 %v558
    %778 = vmatprep.subr.bf16.mxu0 %v561
    %779 = vmatpush1.bf16.msra.mxu0 %v560
    %780 = vmatprep.mubr.bf16.mxu0 %v60
    %781 = vmatmul.mubr.bf16.gmra.mrb[0].mxu0 %v59
    %v782 = vpop.f32.mrb[0].mxu0
    %v783 = vadd.f32 %v742, %v782
    %v784 = vpop.f32.mrb[0].mxu0
    %v785 = vadd.f32 %v744, %v784
    %v786 = vpop.f32.mrb[0].mxu0
    %v787 = vpop.f32.mrb[0].mxu0
    %788 = vdwg.mxu0
    %789 = vmatprep.subr.bf16.mxu0 %v563
    %790 = vmatpush1.bf16.msra.mxu0 %v562
    %791 = vmatprep.subr.bf16.mxu0 0
    %792 = vmatpush1.bf16.msra.mxu0 0
    %793 = vmatprep.subr.bf16.mxu0 0
    %794 = vmatpush1.bf16.msra.mxu0 0
    %795 = vmatprep.subr.bf16.mxu0 0
    %796 = vmatpush1.bf16.msra.mxu0 0
    %797 = vmatprep.subr.bf16.mxu0 0
    %798 = vmatpush1.bf16.msra.mxu0 0
    %799 = vmatprep.subr.bf16.mxu0 0
    %800 = vmatpush1.bf16.msra.mxu0 0
    %801 = vmatprep.subr.bf16.mxu0 0
    %802 = vmatpush1.bf16.msra.mxu0 0
    %803 = vmatprep.subr.bf16.mxu0 0
    %804 = vmatpush1.bf16.msra.mxu0 0
    %805 = vmatprep.subr.bf16.mxu0 0
    %806 = vmatpush1.bf16.msra.mxu0 0
    %807 = vmatprep.subr.bf16.mxu0 0
    %808 = vmatpush1.bf16.msra.mxu0 0
    %809 = vmatprep.subr.bf16.mxu0 0
    %810 = vmatpush1.bf16.msra.mxu0 0
    %811 = vmatprep.subr.bf16.mxu0 0
    %812 = vmatpush1.bf16.msra.mxu0 0
    %813 = vmatprep.subr.bf16.mxu0 0
    %814 = vmatpush1.bf16.msra.mxu0 0
    %815 = vmatprep.subr.bf16.mxu0 0
    %816 = vmatpush1.bf16.msra.mxu0 0
    %817 = vmatprep.subr.bf16.mxu0 0
    %818 = vmatpush1.bf16.msra.mxu0 0
    %819 = vmatprep.subr.bf16.mxu0 0
    %820 = vmatpush1.bf16.msra.mxu0 0
    %821 = vmatprep.mubr.bf16.mxu0 0
    %822 = vmatmul.mubr.bf16.gmra.mrb[0].mxu0 %v664
    %v823 = vpop.f32.mrb[0].mxu0
    %v824 = vadd.f32 %v783, %v823
    %v825 = vpop.f32.mrb[0].mxu0
    %v826 = vadd.f32 %v785, %v825
    %v827 = vpop.f32.mrb[0].mxu0
    %v828 = vpop.f32.mrb[0].mxu0
    %829 = vdwg.mxu0
    %v830 = vmax.f32 %v824, 0.0
    %v831 = vmax.f32 %v826, 0.0
    %v832 = vpack.c.bf16 %v830, %v830
    %v833 = vpack.c.bf16 %v831, %v831
    %v834 = vld [vmem:[#allocation2] sm:$0xf]
    %v835 = vld [vmem:[#allocation2 + $0x4] sm:$0xf]
    %v836 = vld [vmem:[#allocation2 + $0x8] sm:$0xf]
    %v837 = vld [vmem:[#allocation2 + $0xc] sm:$0xf]
    %v838 = vld [vmem:[#allocation2 + $0x10] sm:$0xf]
    %v839 = vld [vmem:[#allocation2 + $0x14] sm:$0xf]
    %v840 = vld [vmem:[#allocation2 + $0x18] sm:$0xf]
    %v841 = vld [vmem:[#allocation2 + $0x1c] sm:$0xf]
    %v842 = vld [vmem:[#allocation2 + $0x20] sm:$0xf]
    %v843 = vld [vmem:[#allocation2 + $0x24] sm:$0xf]
    %v844 = vld [vmem:[#allocation2 + $0x28] sm:$0xf]
    %v845 = vld [vmem:[#allocation2 + $0x2c] sm:$0xf]
    %v846 = vld [vmem:[#allocation2 + $0x30] sm:$0xf]
    %v847 = vld [vmem:[#allocation2 + $0x34] sm:$0xf]
    %v848 = vld [vmem:[#allocation2 + $0x38] sm:$0xf]
    %v849 = vld [vmem:[#allocation2 + $0x3c] sm:$0xf]
    %v850 = vld [vmem:[#allocation2 + $0x40] sm:$0xf]
    %v851 = vld [vmem:[#allocation2 + $0x44] sm:$0xf]
    %v852 = vld [vmem:[#allocation2 + $0x48] sm:$0xf]
    %v853 = vld [vmem:[#allocation2 + $0x4c] sm:$0xf]
    %v854 = vld [vmem:[#allocation2 + $0x50] sm:$0xf]
    %v855 = vld [vmem:[#allocation2 + $0x54] sm:$0xf]
    %v856 = vld [vmem:[#allocation2 + $0x58] sm:$0xf]
    %v857 = vld [vmem:[#allocation2 + $0x5c] sm:$0xf]
    %v858 = vld [vmem:[#allocation2 + $0x60] sm:$0xf]
    %v859 = vld [vmem:[#allocation2 + $0x64] sm:$0xf]
    %v860 = vld [vmem:[#allocation2 + $0x68] sm:$0xf]
    %v861 = vld [vmem:[#allocation2 + $0x6c] sm:$0xf]
    %v862 = vld [vmem:[#allocation2 + $0x70] sm:$0xf]
    %v863 = vld [vmem:[#allocation2 + $0x74] sm:$0xf]
    %v864 = vld [vmem:[#allocation2 + $0x78] sm:$0xf]
    %v865 = vld [vmem:[#allocation2 + $0x7c] sm:$0xf]
    %v866 = vld [vmem:[%s4] sm:$0x1]
    %v868 = vlaneseq
    %v869 = vshrl.u32 %v868, 7
    %v870 = vsub.s32 0, %v869
    %v871 = vrot.slane %v866, %v870
    %v905 = vunpack.c.l.b16 %v834
    %v906 = vunpack.c.l.b16 %v835
    %v907 = vunpack.c.l.b16 %v836
    %v908 = vunpack.c.l.b16 %v837
    %v909 = vunpack.c.l.b16 %v838
    %v910 = vunpack.c.l.b16 %v839
    %v911 = vunpack.c.l.b16 %v840
    %v912 = vunpack.c.l.b16 %v841
    %v913 = vunpack.c.l.b16 %v842
    %v914 = vunpack.c.l.b16 %v843
    %v915 = vunpack.c.l.b16 %v844
    %v916 = vunpack.c.l.b16 %v845
    %v917 = vunpack.c.l.b16 %v846
    %v918 = vunpack.c.l.b16 %v847
    %v919 = vunpack.c.l.b16 %v848
    %v920 = vunpack.c.l.b16 %v849
    %v921 = vunpack.c.l.b16 %v850
    %v922 = vunpack.c.l.b16 %v851
    %v923 = vunpack.c.l.b16 %v852
    %v924 = vunpack.c.l.b16 %v853
    %v925 = vunpack.c.l.b16 %v854
    %v926 = vunpack.c.l.b16 %v855
    %v927 = vunpack.c.l.b16 %v856
    %v928 = vunpack.c.l.b16 %v857
    %v929 = vunpack.c.l.b16 %v858
    %v930 = vunpack.c.l.b16 %v859
    %v931 = vunpack.c.l.b16 %v860
    %v932 = vunpack.c.l.b16 %v861
    %v933 = vunpack.c.l.b16 %v862
    %v934 = vunpack.c.l.b16 %v863
    %v935 = vunpack.c.l.b16 %v864
    %v936 = vunpack.c.l.b16 %v865
    %v937 = vpack.c.b16 %v906, %v905
    %v938 = vpack.c.b16 %v908, %v907
    %v939 = vpack.c.b16 %v910, %v909
    %v940 = vpack.c.b16 %v912, %v911
    %v941 = vpack.c.b16 %v914, %v913
    %v942 = vpack.c.b16 %v916, %v915
    %v943 = vpack.c.b16 %v918, %v917
    %v944 = vpack.c.b16 %v920, %v919
    %v945 = vpack.c.b16 %v922, %v921
    %v946 = vpack.c.b16 %v924, %v923
    %v947 = vpack.c.b16 %v926, %v925
    %v948 = vpack.c.b16 %v928, %v927
    %v949 = vpack.c.b16 %v930, %v929
    %v950 = vpack.c.b16 %v932, %v931
    %v951 = vpack.c.b16 %v934, %v933
    %v952 = vpack.c.b16 %v936, %v935
    %969 = vmatprep.subr.bf16.mxu0 0
    %970 = vmatpush1.bf16.msra.mxu0 %v937
    %971 = vmatprep.subr.bf16.mxu0 0
    %972 = vmatpush1.bf16.msra.mxu0 %v938
    %973 = vmatprep.subr.bf16.mxu0 0
    %974 = vmatpush1.bf16.msra.mxu0 %v939
    %975 = vmatprep.subr.bf16.mxu0 0
    %976 = vmatpush1.bf16.msra.mxu0 %v940
    %977 = vmatprep.subr.bf16.mxu0 0
    %978 = vmatpush1.bf16.msra.mxu0 %v941
    %979 = vmatprep.subr.bf16.mxu0 0
    %980 = vmatpush1.bf16.msra.mxu0 %v942
    %981 = vmatprep.subr.bf16.mxu0 0
    %982 = vmatpush1.bf16.msra.mxu0 %v943
    %983 = vmatprep.subr.bf16.mxu0 0
    %984 = vmatpush1.bf16.msra.mxu0 %v944
    %985 = vmatprep.subr.bf16.mxu0 0
    %986 = vmatpush1.bf16.msra.mxu0 %v945
    %987 = vmatprep.subr.bf16.mxu0 0
    %988 = vmatpush1.bf16.msra.mxu0 %v946
    %989 = vmatprep.subr.bf16.mxu0 0
    %990 = vmatpush1.bf16.msra.mxu0 %v947
    %991 = vmatprep.subr.bf16.mxu0 0
    %992 = vmatpush1.bf16.msra.mxu0 %v948
    %993 = vmatprep.subr.bf16.mxu0 0
    %994 = vmatpush1.bf16.msra.mxu0 %v949
    %995 = vmatprep.subr.bf16.mxu0 0
    %996 = vmatpush1.bf16.msra.mxu0 %v950
    %997 = vmatprep.subr.bf16.mxu0 0
    %998 = vmatpush1.bf16.msra.mxu0 %v951
    %999 = vmatprep.subr.bf16.mxu0 0
    %1000 = vmatpush1.bf16.msra.mxu0 %v952
    %1001 = vmatprep.mubr.bf16.mxu0 %v833
    %1002 = vmatmul.mubr.bf16.gmra.mrb[0].mxu0 %v832
    %v1003 = vpop.f32.mrb[0].mxu0
    %v1004 = vadd.f32 %v871, %v1003
    %v1005 = vpop.f32.mrb[0].mxu0
    %v1006 = vpop.f32.mrb[0].mxu0
    %v1007 = vpop.f32.mrb[0].mxu0
    %1008 = vdwg.mxu0
    %v1009 = vmax.f32 %v1004, 0.0
    %v1010 = vpack.c.bf16 %v1009, %v1009
    %v1011 = vld [vmem:[%s5] sm:$0xf]
    %v1012 = vld [vmem:[%s5 + $0x4] sm:$0xf]
    %v1013 = vld [vmem:[%s5 + $0x8] sm:$0xf]
    %v1014 = vld [vmem:[%s5 + $0xc] sm:$0xf]
    %v1015 = vld [vmem:[%s5 + $0x10] sm:$0xf]
    %v1016 = vld [vmem:[%s5 + $0x14] sm:$0xf]
    %v1017 = vld [vmem:[%s5 + $0x18] sm:$0xf]
    %v1018 = vld [vmem:[%s5 + $0x1c] sm:$0xf]
    %v1019 = vld [vmem:[%s5 + $0x20] sm:$0xf]
    %v1020 = vld [vmem:[%s5 + $0x24] sm:$0xf]
    %v1021 = vld [vmem:[%s5 + $0x28] sm:$0xf]
    %v1022 = vld [vmem:[%s5 + $0x2c] sm:$0xf]
    %v1023 = vld [vmem:[%s5 + $0x30] sm:$0xf]
    %v1024 = vld [vmem:[%s5 + $0x34] sm:$0xf]
    %v1025 = vld [vmem:[%s5 + $0x38] sm:$0xf]
    %v1026 = vld [vmem:[%s5 + $0x3c] sm:$0xf]
    %v1027 = vld [vmem:[%s6] sm:$0x1]
    %v1029 = vlaneseq
    %v1030 = vshrl.u32 %v1029, 7
    %v1031 = vsub.s32 0, %v1030
    %v1032 = vrot.slane %v1027, %v1031
    %v1050 = vunpack.c.l.b16 %v1011
    %v1051 = vunpack.c.l.b16 %v1012
    %v1052 = vunpack.c.l.b16 %v1013
    %v1053 = vunpack.c.l.b16 %v1014
    %v1054 = vunpack.c.l.b16 %v1015
    %v1055 = vunpack.c.l.b16 %v1016
    %v1056 = vunpack.c.l.b16 %v1017
    %v1057 = vunpack.c.l.b16 %v1018
    %v1058 = vunpack.c.l.b16 %v1019
    %v1059 = vunpack.c.l.b16 %v1020
    %v1060 = vunpack.c.l.b16 %v1021
    %v1061 = vunpack.c.l.b16 %v1022
    %v1062 = vunpack.c.l.b16 %v1023
    %v1063 = vunpack.c.l.b16 %v1024
    %v1064 = vunpack.c.l.b16 %v1025
    %v1065 = vunpack.c.l.b16 %v1026
    %v1066 = vpack.c.b16 %v1051, %v1050
    %v1067 = vpack.c.b16 %v1053, %v1052
    %v1068 = vpack.c.b16 %v1055, %v1054
    %v1069 = vpack.c.b16 %v1057, %v1056
    %v1070 = vpack.c.b16 %v1059, %v1058
    %v1071 = vpack.c.b16 %v1061, %v1060
    %v1072 = vpack.c.b16 %v1063, %v1062
    %v1073 = vpack.c.b16 %v1065, %v1064
    %1082 = vmatprep.subr.bf16.mxu0 0
    %1083 = vmatpush1.bf16.msra.mxu0 %v1066
    %1084 = vmatprep.subr.bf16.mxu0 0
    %1085 = vmatpush1.bf16.msra.mxu0 %v1067
    %1086 = vmatprep.subr.bf16.mxu0 0
    %1087 = vmatpush1.bf16.msra.mxu0 %v1068
    %1088 = vmatprep.subr.bf16.mxu0 0
    %1089 = vmatpush1.bf16.msra.mxu0 %v1069
    %1090 = vmatprep.subr.bf16.mxu0 0
    %1091 = vmatpush1.bf16.msra.mxu0 %v1070
    %1092 = vmatprep.subr.bf16.mxu0 0
    %1093 = vmatpush1.bf16.msra.mxu0 %v1071
    %1094 = vmatprep.subr.bf16.mxu0 0
    %1095 = vmatpush1.bf16.msra.mxu0 %v1072
    %1096 = vmatprep.subr.bf16.mxu0 0
    %1097 = vmatpush1.bf16.msra.mxu0 %v1073
    %1098 = vmatprep.subr.bf16.mxu0 0
    %1099 = vmatpush1.bf16.msra.mxu0 0
    %1100 = vmatprep.subr.bf16.mxu0 0
    %1101 = vmatpush1.bf16.msra.mxu0 0
    %1102 = vmatprep.subr.bf16.mxu0 0
    %1103 = vmatpush1.bf16.msra.mxu0 0
    %1104 = vmatprep.subr.bf16.mxu0 0
    %1105 = vmatpush1.bf16.msra.mxu0 0
    %1106 = vmatprep.subr.bf16.mxu0 0
    %1107 = vmatpush1.bf16.msra.mxu0 0
    %1108 = vmatprep.subr.bf16.mxu0 0
    %1109 = vmatpush1.bf16.msra.mxu0 0
    %1110 = vmatprep.subr.bf16.mxu0 0
    %1111 = vmatpush1.bf16.msra.mxu0 0
    %1112 = vmatprep.subr.bf16.mxu0 0
    %1113 = vmatpush1.bf16.msra.mxu0 0
    %1114 = vmatprep.mubr.bf16.mxu0 0
    %1115 = vmatmul.mubr.bf16.gmra.mrb[0].mxu0 %v1010
    %v1116 = vpop.f32.mrb[0].mxu0
    %v1117 = vadd.f32 %v1032, %v1116
    %v1118 = vpop.f32.mrb[0].mxu0
    %v1119 = vpop.f32.mrb[0].mxu0
    %v1120 = vpop.f32.mrb[0].mxu0
    %1121 = vdwg.mxu0
    %v1122 = vmax.f32 %v1117, 0.0
    %v1123 = vpack.c.bf16 %v1122, %v1122
    %v1124 = vld [vmem:[%s7] sm:$0xf]
    %v1125 = vld [vmem:[%s7 + $0x4] sm:$0xf]
    %v1126 = vld [vmem:[%s7 + $0x8] sm:$0xf]
    %v1127 = vld [vmem:[%s7 + $0xc] sm:$0xf]
    %v1128 = vld [vmem:[%s7 + $0x10] sm:$0xf]
    %v1129 = vld [vmem:[%s7 + $0x14] sm:$0xf]
    %v1130 = vld [vmem:[%s7 + $0x18] sm:$0xf]
    %v1131 = vld [vmem:[%s7 + $0x1c] sm:$0xf]
    %v1132 = vld [vmem:[%s8] sm:$0x1]
    %v1134 = vlaneseq
    %v1135 = vshrl.u32 %v1134, 7
    %v1136 = vsub.s32 0, %v1135
    %v1137 = vrot.slane %v1132, %v1136
    %v1147 = vunpack.c.l.b16 %v1124
    %v1148 = vunpack.c.l.b16 %v1125
    %v1149 = vunpack.c.l.b16 %v1126
    %v1150 = vunpack.c.l.b16 %v1127
    %v1151 = vunpack.c.l.b16 %v1128
    %v1152 = vunpack.c.l.b16 %v1129
    %v1153 = vunpack.c.l.b16 %v1130
    %v1154 = vunpack.c.l.b16 %v1131
    %v1155 = vpack.c.b16 %v1148, %v1147
    %v1156 = vpack.c.b16 %v1150, %v1149
    %v1157 = vpack.c.b16 %v1152, %v1151
    %v1158 = vpack.c.b16 %v1154, %v1153
    %vm1163 = vcmask 523264
    %v1165 = vsel %vm1163, %v1123, 0
    %1167 = vmatprep.subr.bf16.mxu0 0
    %1168 = vmatpush1.bf16.msra.mxu0 %v1155
    %1169 = vmatprep.subr.bf16.mxu0 0
    %1170 = vmatpush1.bf16.msra.mxu0 %v1156
    %1171 = vmatprep.subr.bf16.mxu0 0
    %1172 = vmatpush1.bf16.msra.mxu0 %v1157
    %1173 = vmatprep.subr.bf16.mxu0 0
    %1174 = vmatpush1.bf16.msra.mxu0 %v1158
    %1175 = vmatprep.subr.bf16.mxu0 0
    %1176 = vmatpush1.bf16.msra.mxu0 0
    %1177 = vmatprep.subr.bf16.mxu0 0
    %1178 = vmatpush1.bf16.msra.mxu0 0
    %1179 = vmatprep.subr.bf16.mxu0 0
    %1180 = vmatpush1.bf16.msra.mxu0 0
    %1181 = vmatprep.subr.bf16.mxu0 0
    %1182 = vmatpush1.bf16.msra.mxu0 0
    %1183 = vmatprep.subr.bf16.mxu0 0
    %1184 = vmatpush1.bf16.msra.mxu0 0
    %1185 = vmatprep.subr.bf16.mxu0 0
    %1186 = vmatpush1.bf16.msra.mxu0 0
    %1187 = vmatprep.subr.bf16.mxu0 0
    %1188 = vmatpush1.bf16.msra.mxu0 0
    %1189 = vmatprep.subr.bf16.mxu0 0
    %1190 = vmatpush1.bf16.msra.mxu0 0
    %1191 = vmatprep.subr.bf16.mxu0 0
    %1192 = vmatpush1.bf16.msra.mxu0 0
    %1193 = vmatprep.subr.bf16.mxu0 0
    %1194 = vmatpush1.bf16.msra.mxu0 0
    %1195 = vmatprep.subr.bf16.mxu0 0
    %1196 = vmatpush1.bf16.msra.mxu0 0
    %1197 = vmatprep.subr.bf16.mxu0 0
    %1198 = vmatpush1.bf16.msra.mxu0 0
    %1199 = vmatprep.mubr.bf16.mxu0 0
    %1200 = vmatmul.mubr.bf16.gmra.mrb[0].mxu0 %v1165
    %v1201 = vpop.f32.mrb[0].mxu0
    %v1202 = vadd.f32 %v1137, %v1201
    %v1203 = vpop.f32.mrb[0].mxu0
    %v1204 = vpop.f32.mrb[0].mxu0
    %v1205 = vpop.f32.mrb[0].mxu0
    %1206 = vdwg.mxu0
    %1207 = vmax.xlane.f32.xlu0 %v1202
    %v1208 = vpop.xlane.xlu0 %1207
    %v1209 = vsub.f32 %v1202, %v1208
    %v1210 = vmul.f32 %v1209, 1.442695
    %v1211 = vpow.pop %v1210
    %1212 = vadd.xlane.f32.xlu0 %v1211
    %v1213 = vpop.xlane.xlu0 %1212
    %v1214 = vlog2.pop %v1213
    %v1215 = vmul.f32 %v1214, 0.6931472
    %v1216 = vsub.f32 %v1209, %v1215
    %v1217 = vpack.c.bf16 %v1216, %v1216
    %1218 = vst [vmem:[#allocation5] sm:$0xf] %v1217
    // Predicated region
    $region42: #{mlp_forward.1} parent=1 // pred_check
      _
    $region43: #{mlp_forward.1} parent=1 // pred_check_branch
      %1220 = sbr.rel (0) target = $region45
    $region44: #{mlp_forward.1} parent=1 // pred_region
      %s1222 = ssub.s32 64, 64
      %1223 = vsyncadd [#allocation4], %s1222
      %s1225 = sshll.u32 [#allocation5], 4
      %s1226 = int_to_ptr.vmem [resolvable:$true] %s1225
      %1228 = dma.vmem_to_hbm [thread:$0]  %s1226, 64, %s9, [#allocation4]
    $region45: #{mlp_forward.1} parent=1 // pred_fallthru
      _
    // Predicated region
    $region46: #{mlp_forward.1} parent=1 // pred_check
      _
    $region47: #{mlp_forward.1} parent=1 // pred_check_branch
      %1230 = sbr.rel (0) target = $region49
    $region48: #{mlp_forward.1} parent=1 // pred_region
      %1231 = dma.done [#allocation4], 64
    $region49: #{mlp_forward.1} parent=1 // pred_fallthru
      _
    %1232 = vsyncpa [#allocation3], 1
    %1233 = vsyncpa [#allocation4], 1

</llo_original>
